<compile_context>
chip_gen: v5e
topology: v5e:2x2
jax: 0.10.0
libtpu: 0.0.40
codegen_flags: <defaults>
</compile_context>

<pallas_src>
import jax
import jax.numpy as jnp
from jax.experimental import pallas as pl
from jax.experimental.pallas import tpu as pltpu


def _round_up(x, m):
    return ((x + m - 1) // m) * m


def _ssm_kernel(x_ref, w1_ref, b1_ref, w2_ref, b2_ref, o_ref):
    # x_ref: (tm, Dp) token rows (compute dtype)
    # w*_ref: (Dp, Dp) weights in (in, out) layout (compute dtype)
    # b*_ref: (1, Dp) biases in f32
    x = x_ref[...]

    # linear1: x @ W1 (NN contraction, f32 accumulation on the MXU) + b1
    h = jnp.dot(x, w1_ref[...], preferred_element_type=jnp.float32)
    h = h + b1_ref[...]

    # SiLU in f32: h * sigmoid(h).  exp() runs on the EUP slot.
    # (For a v5e/VALU-bound small-D regime, h * pl.reciprocal(1 + exp(-h),
    #  approx=True) keeps the divide on the EUP too; kept exact here.)
    h = h * jax.nn.sigmoid(h)

    # linear2: silu @ W2 + b2, f32 accumulation.
    out = jnp.dot(h.astype(w2_ref.dtype), w2_ref[...],
                  preferred_element_type=jnp.float32)
    out = out + b2_ref[...]

    o_ref[...] = out.astype(o_ref.dtype)


def selective_ssm(x, w1, b1, w2, b2, *, block_m=512, compute_dtype=jnp.bfloat16):
    """Fused forward: SiLU(x @ w1.T + b1) @ w2.T + b2.

    x : (B, S, D)       w1, w2 : (D, D) in PyTorch nn.Linear (out, in) layout
    b1, b2 : (D,)
    compute_dtype: dtype of the matmul operands (x and weights).  bf16 is the
      right default on all current TPU generations (the MXU is bf16-native on
      v5e/v6e/v7x; accumulation stays f32).  Pass jnp.float32 for bit-accurate
      checks.  The returned array keeps x.dtype regardless.
    """
    B, S, D = x.shape
    M = B * S
    LANE = 128

    out_dtype = x.dtype
    if compute_dtype is None:
        compute_dtype = x.dtype
    compute_dtype = jnp.dtype(compute_dtype)
    itemsize = compute_dtype.itemsize
    out_itemsize = jnp.dtype(out_dtype).itemsize

    # Sublane packing of the compute dtype: f32 -> 8, bf16 -> 16, int8/fp8 -> 32.
    sub = {4: 8, 2: 16, 1: 32}.get(itemsize, 8)

    # Feature dim padded to the 128-lane width (contraction dim: explicit zeros).
    Dp = _round_up(max(D, LANE), LANE)

    # Row tile: multiple of the sublane pack; aim for >= 2 grid steps when M
    # allows it so the "parallel" axis can shard across v7x's 2 TensorCores.
    tm = min(_round_up(block_m, sub), _round_up(max(pl.cdiv(M, 2), 1), sub))
    tm = max(tm, sub)
    grid_m = pl.cdiv(M, tm)

    # One-time HBM-side prep (amortized over all row tiles):
    #   cast to compute dtype, transpose weights to (in, out), pad feature dim.
    x2d = x.reshape(M, D).astype(compute_dtype)
    w1t = w1.T.astype(compute_dtype)   # (in, out)
    w2t = w2.T.astype(compute_dtype)
    if Dp != D:
        x2d = jnp.pad(x2d, ((0, 0), (0, Dp - D)))
        w1t = jnp.pad(w1t, ((0, Dp - D), (0, Dp - D)))
        w2t = jnp.pad(w2t, ((0, Dp - D), (0, Dp - D)))
    b1p = jnp.pad(b1.astype(jnp.float32), (0, Dp - D)).reshape(1, Dp)
    b2p = jnp.pad(b2.astype(jnp.float32), (0, Dp - D)).reshape(1, Dp)

    # Explicit VMEM budget: single-buffered weights/biases + double-buffered
    # x/out tiles, plus headroom for compiler-internal scratch.
    vmem_bytes = (2 * Dp * Dp * itemsize          # W1 + W2 (single-buffered)
                  + 2 * Dp * 4                    # biases (f32)
                  + 2 * tm * Dp * itemsize        # x tile, double-buffered
                  + 2 * tm * Dp * out_itemsize)   # out tile, double-buffered
    vmem_limit = min(int(vmem_bytes * 1.25) + (4 << 20), 100 << 20)

    cost = pl.CostEstimate(
        flops=4 * M * Dp * Dp,                               # two matmuls
        transcendentals=M * Dp,                              # sigmoid/exp
        bytes_accessed=(M * Dp * itemsize                    # x read
                        + M * Dp * out_itemsize              # out write
                        + 2 * Dp * Dp * itemsize             # weights
                        + 2 * Dp * 4),                       # biases
    )

    resident = pl.Buffered(1)   # constant-index blocks: no double buffer needed
    out2d = pl.pallas_call(
        _ssm_kernel,
        out_shape=jax.ShapeDtypeStruct((M, Dp), out_dtype),
        grid_spec=pl.GridSpec(
            grid=(grid_m,),
            in_specs=[
                pl.BlockSpec((tm, Dp), lambda i: (i, 0)),        # x: pipelined
                pl.BlockSpec((Dp, Dp), lambda i: (0, 0), pipeline_mode=resident),
                pl.BlockSpec((1, Dp), lambda i: (0, 0), pipeline_mode=resident),
                pl.BlockSpec((Dp, Dp), lambda i: (0, 0), pipeline_mode=resident),
                pl.BlockSpec((1, Dp), lambda i: (0, 0), pipeline_mode=resident),
            ],
            out_specs=pl.BlockSpec((tm, Dp), lambda i: (i, 0)),
        ),
        compiler_params=pltpu.CompilerParams(
            # Row tiles are independent -> megacore-shardable on v7x (2 TCs).
            dimension_semantics=("parallel",),
            vmem_limit_bytes=vmem_limit,
        ),
        cost_estimate=cost,
    )(x2d, w1t, b1p, w2t, b2p)

    # TODO(synk): for d_model large enough that the two (Dp, Dp) resident
    # weights exceed ~48 MiB (v7x has 64 MiB VMEM per TensorCore), add a
    # K/N-tiled variant with an f32 VMEM accumulator scratch and a trailing
    # "arbitrary" reduction grid axis.
    return out2d[:, :D].reshape(B, S, D)


def _reference(x, w1, b1, w2, b2):
    h = jnp.einsum("bsd,ed->bse", x, w1) + b1
    h = h * jax.nn.sigmoid(h)
    return jnp.einsum("bsd,ed->bse", h, w2) + b2


if __name__ == "__main__":
    # Small shapes consistent with the module: d_model=32, seq_len=8, batch=2.
    B, S, D = 2, 8, 32

    key = jax.random.PRNGKey(0)
    kx, kw1, kb1, kw2, kb2 = jax.random.split(key, 5)

    x = jax.random.normal(kx, (B, S, D), dtype=jnp.float32)
    # nn.Linear shapes: weight (out, in), bias (out,).
    bound = 1.0 / jnp.sqrt(jnp.float32(D))
    w1 = jax.random.uniform(kw1, (D, D), minval=-bound, maxval=bound, dtype=jnp.float32)
    b1 = jax.random.uniform(kb1, (D,), minval=-bound, maxval=bound, dtype=jnp.float32)
    w2 = jax.random.uniform(kw2, (D, D), minval=-bound, maxval=bound, dtype=jnp.float32)
    b2 = jax.random.uniform(kb2, (D,), minval=-bound, maxval=bound, dtype=jnp.float32)

    ref = _reference(x, w1, b1, w2, b2)

    # Default path: bf16 matmul operands, f32 accumulation, output in x.dtype.
    out = jax.block_until_ready(selective_ssm(x, w1, b1, w2, b2))
    assert out.shape == (B, S, D)
    assert out.dtype == x.dtype
    assert jnp.allclose(out, ref, atol=5e-2, rtol=5e-2), "bf16 path mismatch vs reference"

    # Full-f32 path for a tight numerical check of the kernel structure.
    out_f32 = jax.block_until_ready(
        selective_ssm(x, w1, b1, w2, b2, compute_dtype=jnp.float32))
    assert jnp.allclose(out_f32, ref, atol=1e-4, rtol=1e-4), "f32 path mismatch vs reference"

    print("KERNEL_OK")
</pallas_src>

<mosaic_0001>
module attributes {stable_mosaic.version = 11 : i64} {
  func.func @_ssm_kernel(%arg0: i32, %arg1: memref<16x128xbf16, #tpu.memory_space<vmem>>, %arg2: memref<128x128xbf16, #tpu.memory_space<vmem>>, %arg3: memref<1x128xf32, #tpu.memory_space<vmem>>, %arg4: memref<128x128xbf16, #tpu.memory_space<vmem>>, %arg5: memref<1x128xf32, #tpu.memory_space<vmem>>, %arg6: memref<16x128xf32, #tpu.memory_space<vmem>>) attributes {dimension_semantics = [#tpu.dimension_semantics<parallel>], iteration_bounds = array<i64: 1>, scalar_prefetch = 0 : i64, scratch_operands = 0 : i64, tpu.core_type = #tpu.core_type<tc>, window_params = [{transform_indices = @transform_0, window_bounds = array<i64: 16, 128>}, {pipeline_mode = #tpu.pipeline_mode<synchronous>, transform_indices = @transform_1, window_bounds = array<i64: 128, 128>}, {pipeline_mode = #tpu.pipeline_mode<synchronous>, transform_indices = @transform_2, window_bounds = array<i64: 1, 128>}, {pipeline_mode = #tpu.pipeline_mode<synchronous>, transform_indices = @transform_3, window_bounds = array<i64: 128, 128>}, {pipeline_mode = #tpu.pipeline_mode<synchronous>, transform_indices = @transform_4, window_bounds = array<i64: 1, 128>}, {transform_indices = @transform_5, window_bounds = array<i64: 16, 128>}]} {
    %c0 = arith.constant 0 : index
    %c0_0 = arith.constant 0 : index
    %0 = vector.load %arg1[%c0, %c0_0] : memref<16x128xbf16, #tpu.memory_space<vmem>>, vector<16x128xbf16>
    %c0_1 = arith.constant 0 : index
    %c0_2 = arith.constant 0 : index
    %1 = vector.load %arg2[%c0_1, %c0_2] : memref<128x128xbf16, #tpu.memory_space<vmem>>, vector<128x128xbf16>
    %cst = arith.constant dense<0.000000e+00> : vector<16x128xf32>
    %2 = tpu.matmul %0, %1, %cst {dimension_numbers = #tpu.dot_dimension_numbers<[1], [0], [0], [1], [0, 0, 1, 1], [], []>} : vector<16x128xbf16>, vector<128x128xbf16>, vector<16x128xf32> -> vector<16x128xf32>
    %c0_3 = arith.constant 0 : index
    %c0_4 = arith.constant 0 : index
    %3 = vector.load %arg3[%c0_3, %c0_4] : memref<1x128xf32, #tpu.memory_space<vmem>>, vector<1x128xf32>
    %4 = vector.broadcast %3 : vector<1x128xf32> to vector<16x128xf32>
    %5 = arith.addf %2, %4 : vector<16x128xf32>
    %6 = arith.negf %5 : vector<16x128xf32>
    %7 = math.exp %6 : vector<16x128xf32>
    %cst_5 = arith.constant 1.000000e+00 : f32
    %8 = vector.broadcast %cst_5 : f32 to vector<16x128xf32>
    %9 = arith.addf %8, %7 : vector<16x128xf32>
    %10 = arith.divf %8, %9 : vector<16x128xf32>
    %11 = arith.mulf %5, %10 : vector<16x128xf32>
    %12 = arith.truncf %11 : vector<16x128xf32> to vector<16x128xbf16>
    %c0_6 = arith.constant 0 : index
    %c0_7 = arith.constant 0 : index
    %13 = vector.load %arg4[%c0_6, %c0_7] : memref<128x128xbf16, #tpu.memory_space<vmem>>, vector<128x128xbf16>
    %cst_8 = arith.constant dense<0.000000e+00> : vector<16x128xf32>
    %14 = tpu.matmul %12, %13, %cst_8 {dimension_numbers = #tpu.dot_dimension_numbers<[1], [0], [0], [1], [0, 0, 1, 1], [], []>} : vector<16x128xbf16>, vector<128x128xbf16>, vector<16x128xf32> -> vector<16x128xf32>
    %c0_9 = arith.constant 0 : index
    %c0_10 = arith.constant 0 : index
    %15 = vector.load %arg5[%c0_9, %c0_10] : memref<1x128xf32, #tpu.memory_space<vmem>>, vector<1x128xf32>
    %16 = vector.broadcast %15 : vector<1x128xf32> to vector<16x128xf32>
    %17 = arith.addf %14, %16 : vector<16x128xf32>
    %c0_11 = arith.constant 0 : index
    %c0_12 = arith.constant 0 : index
    %18 = vector.load %arg6[%c0_11, %c0_12] : memref<16x128xf32, #tpu.memory_space<vmem>>, vector<16x128xf32>
    tpu.vector_store %arg6[%c0_11, %c0_12], %17 {strides = array<i32>} : memref<16x128xf32, #tpu.memory_space<vmem>>, vector<16x128xf32>,
    return
  }
  func.func @transform_0(%arg0: i32) -> (i32, i32) {
    %c0_i32 = arith.constant 0 : i32
    %c0_i32_0 = arith.constant 0 : i32
    return %arg0, %c0_i32 : i32, i32
  }
  func.func @transform_1(%arg0: i32) -> (i32, i32) {
    %c0_i32 = arith.constant 0 : i32
    %c0_i32_0 = arith.constant 0 : i32
    %c0_i32_1 = arith.constant 0 : i32
    return %c0_i32, %c0_i32_0 : i32, i32
  }
  func.func @transform_2(%arg0: i32) -> (i32, i32) {
    %c0_i32 = arith.constant 0 : i32
    %c0_i32_0 = arith.constant 0 : i32
    %c0_i32_1 = arith.constant 0 : i32
    return %c0_i32, %c0_i32_0 : i32, i32
  }
  func.func @transform_3(%arg0: i32) -> (i32, i32) {
    %c0_i32 = arith.constant 0 : i32
    %c0_i32_0 = arith.constant 0 : i32
    %c0_i32_1 = arith.constant 0 : i32
    return %c0_i32, %c0_i32_0 : i32, i32
  }
  func.func @transform_4(%arg0: i32) -> (i32, i32) {
    %c0_i32 = arith.constant 0 : i32
    %c0_i32_0 = arith.constant 0 : i32
    %c0_i32_1 = arith.constant 0 : i32
    return %c0_i32, %c0_i32_0 : i32, i32
  }
  func.func @transform_5(%arg0: i32) -> (i32, i32) {
    %c0_i32 = arith.constant 0 : i32
    %c0_i32_0 = arith.constant 0 : i32
    return %arg0, %c0_i32 : i32, i32
  }
}

</mosaic_0001>

<llo_original>
// kernel: tpu_custom_call.1
$region0: #{tpu_custom_call.1}
  #allocation0 [shape = 'u32[]', space=smem, size = 0x4, offset = 0x4, fixed_abs, tag = 'smem constant byte address 0x4 - core index']
  #allocation1 [shape = 'u32[72,128]{1,0:T(1,128)}', space=vmem, size = 0x9000, scoped, tag = 'internal scratch']
  %s0 = inlined_call_operand.hbm [shape: bf16[16,128], index: 0, kind: input, shape index: {}]
  %s1 = inlined_call_operand.hbm [shape: bf16[128,128], index: 1, kind: input, shape index: {}]
  %s2 = inlined_call_operand.vmem [shape: f32[1,128], index: 2, kind: input, shape index: {}]
  %s3 = inlined_call_operand.hbm [shape: bf16[128,128], index: 3, kind: input, shape index: {}]
  %s4 = inlined_call_operand.vmem [shape: f32[1,128], index: 4, kind: input, shape index: {}]
  %s5 = inlined_call_operand.hbm [shape: f32[16,128], index: 5, kind: output, shape index: {}]
  %s6 = sld [smem:[#allocation0]]
  $region42: #{tpu_custom_call.1} parent=0
    _
  %s8 = ssub.s32 1, %s6
  %s9 = scalar_select 0, %s8, %s6
  $region1: #{tpu_custom_call.1} parent=0
    #allocation2 [shape = 'u8[4096]{0}', space=vmem, size = 0x1000, scoped, tag = 'input window, operand 0, single buffered']
    #allocation3 [shape = 's32[1]{0}', space=sflag, size = 0x4, scoped, tag = 'scoped memory for tpu_custom_call.1']
    #allocation4 [shape = 's32[1]{0}', space=sflag, size = 0x4, scoped, tag = 'scoped memory for tpu_custom_call.1']
    #allocation5 [shape = 'u8[32768]{0}', space=vmem, size = 0x8000, scoped, tag = 'input window, operand 1, single buffered']
    #allocation6 [shape = 's32[1]{0}', space=sflag, size = 0x4, scoped, tag = 'scoped memory for tpu_custom_call.1']
    #allocation7 [shape = 'u8[32768]{0}', space=vmem, size = 0x8000, scoped, tag = 'input window, operand 3, single buffered']
    #allocation8 [shape = 'u8[8192]{0}', space=vmem, size = 0x2000, scoped, tag = 'output window, operand 0, single buffered']
    %10 = vsyncpa [#allocation3], 0
    %11 = vsyncpa [#allocation6], 0
    %12 = vsyncpa [#allocation4], 0
    // Predicated region
    $region2: #{tpu_custom_call.1} parent=1 // pred_check
      _
    $region3: #{tpu_custom_call.1} parent=1 // pred_check_branch
      %14 = sbr.rel (0) target = $region5
    $region4: #{tpu_custom_call.1} parent=1 // pred_region
      %16 = vsyncadd [#allocation3], 0
      %s17 = sshll.u32 %s0, 4
      %s18 = int_to_ptr.hbm [resolvable:$true] %s17
      %s19 = sshll.u32 [#allocation2], 4
      %s20 = int_to_ptr.vmem [resolvable:$true] %s19
      %25 = dma.hbm_to_vmem [thread:$0]  %s18, 128, %s20, [#allocation3], 64, 64, 4
    $region5: #{tpu_custom_call.1} parent=1 // pred_fallthru
      _
    // Predicated region
    $region6: #{tpu_custom_call.1} parent=1 // pred_check
      _
    $region7: #{tpu_custom_call.1} parent=1 // pred_check_branch
      %27 = sbr.rel (0) target = $region9
    $region8: #{tpu_custom_call.1} parent=1 // pred_region
      %29 = vsyncadd [#allocation6], 0
      %s30 = sshll.u32 %s1, 4
      %s31 = int_to_ptr.hbm [resolvable:$true] %s30
      %s32 = sshll.u32 [#allocation5], 4
      %s33 = int_to_ptr.vmem [resolvable:$true] %s32
      %38 = dma.hbm_to_vmem [thread:$0]  %s31, 1024, %s33, [#allocation6], 64, 64, 4
    $region9: #{tpu_custom_call.1} parent=1 // pred_fallthru
      _
    // Predicated region
    $region10: #{tpu_custom_call.1} parent=1 // pred_check
      _
    $region11: #{tpu_custom_call.1} parent=1 // pred_check_branch
      %40 = sbr.rel (0) target = $region13
    $region12: #{tpu_custom_call.1} parent=1 // pred_region
      _
    $region13: #{tpu_custom_call.1} parent=1 // pred_fallthru
      _
    // Predicated region
    $region14: #{tpu_custom_call.1} parent=1 // pred_check
      _
    $region15: #{tpu_custom_call.1} parent=1 // pred_check_branch
      %42 = sbr.rel (0) target = $region17
    $region16: #{tpu_custom_call.1} parent=1 // pred_region
      %44 = vsyncadd [#allocation6], 0
      %s45 = sshll.u32 %s3, 4
      %s46 = int_to_ptr.hbm [resolvable:$true] %s45
      %s47 = sshll.u32 [#allocation7], 4
      %s48 = int_to_ptr.vmem [resolvable:$true] %s47
      %53 = dma.hbm_to_vmem [thread:$0]  %s46, 1024, %s48, [#allocation6], 64, 64, 4
    $region17: #{tpu_custom_call.1} parent=1 // pred_fallthru
      _
    // Predicated region
    $region18: #{tpu_custom_call.1} parent=1 // pred_check
      _
    $region19: #{tpu_custom_call.1} parent=1 // pred_check_branch
      %55 = sbr.rel (0) target = $region21
    $region20: #{tpu_custom_call.1} parent=1 // pred_region
      _
    $region21: #{tpu_custom_call.1} parent=1 // pred_fallthru
      _
    // Predicated region
    $region22: #{tpu_custom_call.1} parent=1 // pred_check
      _
    $region23: #{tpu_custom_call.1} parent=1 // pred_check_branch
      %57 = sbr.rel (0) target = $region25
    $region24: #{tpu_custom_call.1} parent=1 // pred_region
      %59 = dma.done [#allocation3], 128
    $region25: #{tpu_custom_call.1} parent=1 // pred_fallthru
      _
    // Predicated region
    $region26: #{tpu_custom_call.1} parent=1 // pred_check
      _
    $region27: #{tpu_custom_call.1} parent=1 // pred_check_branch
      %61 = sbr.rel (0) target = $region29
    $region28: #{tpu_custom_call.1} parent=1 // pred_region
      %63 = dma.done [#allocation6], 1024
    $region29: #{tpu_custom_call.1} parent=1 // pred_fallthru
      _
    // Predicated region
    $region30: #{tpu_custom_call.1} parent=1 // pred_check
      _
    $region31: #{tpu_custom_call.1} parent=1 // pred_check_branch
      %65 = sbr.rel (0) target = $region33
    $region32: #{tpu_custom_call.1} parent=1 // pred_region
      %67 = dma.done [#allocation6], 1024
    $region33: #{tpu_custom_call.1} parent=1 // pred_fallthru
      _
    %v68 = vld [vmem:[#allocation2] sm:$0xf]
    %v69 = vld [vmem:[#allocation2 + $0x4] sm:$0xf]
    %v70 = vld [vmem:[#allocation5] sm:$0xf]
    %v71 = vld [vmem:[#allocation5 + $0x4] sm:$0xf]
    %v72 = vld [vmem:[#allocation5 + $0x8] sm:$0xf]
    %v73 = vld [vmem:[#allocation5 + $0xc] sm:$0xf]
    %v74 = vld [vmem:[#allocation5 + $0x10] sm:$0xf]
    %v75 = vld [vmem:[#allocation5 + $0x14] sm:$0xf]
    %v76 = vld [vmem:[#allocation5 + $0x18] sm:$0xf]
    %v77 = vld [vmem:[#allocation5 + $0x1c] sm:$0xf]
    %v78 = vld [vmem:[#allocation5 + $0x20] sm:$0xf]
    %v79 = vld [vmem:[#allocation5 + $0x24] sm:$0xf]
    %v80 = vld [vmem:[#allocation5 + $0x28] sm:$0xf]
    %v81 = vld [vmem:[#allocation5 + $0x2c] sm:$0xf]
    %v82 = vld [vmem:[#allocation5 + $0x30] sm:$0xf]
    %v83 = vld [vmem:[#allocation5 + $0x34] sm:$0xf]
    %v84 = vld [vmem:[#allocation5 + $0x38] sm:$0xf]
    %v85 = vld [vmem:[#allocation5 + $0x3c] sm:$0xf]
    %v86 = vld [vmem:[%s2] sm:$0x1]
    %v88 = vperm.slane %v86, 0
    %v92 = vunpack.c.l.b16 %v68
    %v93 = vunpack.c.l.b16 %v69
    %v94 = vpack.c.b16 %v93, %v92
    %v112 = vunpack.c.l.b16 %v70
    %v113 = vunpack.c.l.b16 %v71
    %v114 = vunpack.c.l.b16 %v72
    %v115 = vunpack.c.l.b16 %v73
    %v116 = vunpack.c.l.b16 %v74
    %v117 = vunpack.c.l.b16 %v75
    %v118 = vunpack.c.l.b16 %v76
    %v119 = vunpack.c.l.b16 %v77
    %v120 = vunpack.c.l.b16 %v78
    %v121 = vunpack.c.l.b16 %v79
    %v122 = vunpack.c.l.b16 %v80
    %v123 = vunpack.c.l.b16 %v81
    %v124 = vunpack.c.l.b16 %v82
    %v125 = vunpack.c.l.b16 %v83
    %v126 = vunpack.c.l.b16 %v84
    %v127 = vunpack.c.l.b16 %v85
    %v128 = vpack.c.b16 %v113, %v112
    %v129 = vpack.c.b16 %v115, %v114
    %v130 = vpack.c.b16 %v117, %v116
    %v131 = vpack.c.b16 %v119, %v118
    %v132 = vpack.c.b16 %v121, %v120
    %v133 = vpack.c.b16 %v123, %v122
    %v134 = vpack.c.b16 %v125, %v124
    %v135 = vpack.c.b16 %v127, %v126
    %144 = vmatpush.bf16.msra.mxu0 %v135
    %145 = vmatpush.bf16.msra.mxu0 %v134
    %146 = vmatpush.bf16.msra.mxu0 %v133
    %147 = vmatpush.bf16.msra.mxu0 %v132
    %148 = vmatpush.bf16.msra.mxu0 %v131
    %149 = vmatpush.bf16.msra.mxu0 %v130
    %150 = vmatpush.bf16.msra.mxu0 %v129
    %151 = vmatpush.bf16.msra.mxu0 %v128
    %152 = vmatmul.bf16.gmra.mxu0 %v94
    %v153 = vpop.f32.mrf.mxu0
    %v154 = vadd.f32 %v88, %v153
    %v155 = vpop.f32.mrf.mxu0
    %v156 = vadd.f32 %v88, %v155
    %157 = vdwg.mxu0
    %v158 = vxor.u32 %v154, 2147483648
    %v159 = vxor.u32 %v156, 2147483648
    %v160 = vmul.f32 %v158, 1.442695
    %v161 = vpow.pop %v160
    %v162 = vmul.f32 %v159, 1.442695
    %v163 = vpow.pop %v162
    %v164 = vadd.f32 %v161, 1.0
    %v165 = vadd.f32 %v163, 1.0
    %v166 = vrcp.pop %v164
    %v167 = vmul.f32 %v164, %v166
    %v168 = vsub.f32 1.0, %v167
    %v169 = vmul.f32 %v166, %v168
    %v170 = vadd.f32 %v166, %v169
    %vm171 = vweird.f32 %v164
    %vm172 = vweird.f32 %v166
    %vm173 = vmor %vm171, %vm172
    %v174 = vsel %vm173, %v166, %v170
    %v175 = vand.u32 2147483647, %v164
    %vm176 = vcmp.eq.f32.partialorder %v175, 8.507059e+37
    %v177 = vand.u32 %v164, 2147483648
    %v178 = vor.u32 1.1754944e-38, %v177
    %v179 = vsel %vm176, %v178, %v174
    %v180 = vmul.f32 1.0, %v179
    %v181 = vrcp.pop %v165
    %v182 = vmul.f32 %v165, %v181
    %v183 = vsub.f32 1.0, %v182
    %v184 = vmul.f32 %v181, %v183
    %v185 = vadd.f32 %v181, %v184
    %vm186 = vweird.f32 %v165
    %vm187 = vweird.f32 %v181
    %vm188 = vmor %vm186, %vm187
    %v189 = vsel %vm188, %v181, %v185
    %v190 = vand.u32 2147483647, %v165
    %vm191 = vcmp.eq.f32.partialorder %v190, 8.507059e+37
    %v192 = vand.u32 %v165, 2147483648
    %v193 = vor.u32 1.1754944e-38, %v192
    %v194 = vsel %vm191, %v193, %v189
    %v195 = vmul.f32 1.0, %v194
    %v196 = vmul.f32 %v154, %v180
    %v197 = vmul.f32 %v156, %v195
    %v198 = vpack.c.bf16 %v197, %v196
    %v199 = vld [vmem:[#allocation7] sm:$0xf]
    %v200 = vld [vmem:[#allocation7 + $0x4] sm:$0xf]
    %v201 = vld [vmem:[#allocation7 + $0x8] sm:$0xf]
    %v202 = vld [vmem:[#allocation7 + $0xc] sm:$0xf]
    %v203 = vld [vmem:[#allocation7 + $0x10] sm:$0xf]
    %v204 = vld [vmem:[#allocation7 + $0x14] sm:$0xf]
    %v205 = vld [vmem:[#allocation7 + $0x18] sm:$0xf]
    %v206 = vld [vmem:[#allocation7 + $0x1c] sm:$0xf]
    %v207 = vld [vmem:[#allocation7 + $0x20] sm:$0xf]
    %v208 = vld [vmem:[#allocation7 + $0x24] sm:$0xf]
    %v209 = vld [vmem:[#allocation7 + $0x28] sm:$0xf]
    %v210 = vld [vmem:[#allocation7 + $0x2c] sm:$0xf]
    %v211 = vld [vmem:[#allocation7 + $0x30] sm:$0xf]
    %v212 = vld [vmem:[#allocation7 + $0x34] sm:$0xf]
    %v213 = vld [vmem:[#allocation7 + $0x38] sm:$0xf]
    %v214 = vld [vmem:[#allocation7 + $0x3c] sm:$0xf]
    %v215 = vld [vmem:[%s4] sm:$0x1]
    %v217 = vperm.slane %v215, 0
    %v235 = vunpack.c.l.b16 %v199
    %v236 = vunpack.c.l.b16 %v200
    %v237 = vunpack.c.l.b16 %v201
    %v238 = vunpack.c.l.b16 %v202
    %v239 = vunpack.c.l.b16 %v203
    %v240 = vunpack.c.l.b16 %v204
    %v241 = vunpack.c.l.b16 %v205
    %v242 = vunpack.c.l.b16 %v206
    %v243 = vunpack.c.l.b16 %v207
    %v244 = vunpack.c.l.b16 %v208
    %v245 = vunpack.c.l.b16 %v209
    %v246 = vunpack.c.l.b16 %v210
    %v247 = vunpack.c.l.b16 %v211
    %v248 = vunpack.c.l.b16 %v212
    %v249 = vunpack.c.l.b16 %v213
    %v250 = vunpack.c.l.b16 %v214
    %v251 = vpack.c.b16 %v236, %v235
    %v252 = vpack.c.b16 %v238, %v237
    %v253 = vpack.c.b16 %v240, %v239
    %v254 = vpack.c.b16 %v242, %v241
    %v255 = vpack.c.b16 %v244, %v243
    %v256 = vpack.c.b16 %v246, %v245
    %v257 = vpack.c.b16 %v248, %v247
    %v258 = vpack.c.b16 %v250, %v249
    %267 = vmatpush.bf16.msra.mxu0 %v258
    %268 = vmatpush.bf16.msra.mxu0 %v257
    %269 = vmatpush.bf16.msra.mxu0 %v256
    %270 = vmatpush.bf16.msra.mxu0 %v255
    %271 = vmatpush.bf16.msra.mxu0 %v254
    %272 = vmatpush.bf16.msra.mxu0 %v253
    %273 = vmatpush.bf16.msra.mxu0 %v252
    %274 = vmatpush.bf16.msra.mxu0 %v251
    %275 = vmatmul.bf16.gmra.mxu0 %v198
    %v276 = vpop.f32.mrf.mxu0
    %v277 = vadd.f32 %v217, %v276
    %v278 = vpop.f32.mrf.mxu0
    %v279 = vadd.f32 %v217, %v278
    %280 = vdwg.mxu0
    %281 = vst [vmem:[#allocation8] sm:$0xff] %v277
    %282 = vst [vmem:[#allocation8 + $0x8] sm:$0xff] %v279
    // Predicated region
    $region34: #{tpu_custom_call.1} parent=1 // pred_check
      _
    $region35: #{tpu_custom_call.1} parent=1 // pred_check_branch
      %284 = sbr.rel (0) target = $region37
    $region36: #{tpu_custom_call.1} parent=1 // pred_region
      %286 = vsyncadd [#allocation4], 0
      %s287 = sshll.u32 [#allocation8], 4
      %s288 = int_to_ptr.vmem [resolvable:$true] %s287
      %s289 = sshll.u32 %s5, 4
      %s290 = int_to_ptr.hbm [resolvable:$true] %s289
      %295 = dma.vmem_to_hbm [thread:$0]  %s288, 256, %s290, [#allocation4], 128, 128, 8
    $region37: #{tpu_custom_call.1} parent=1 // pred_fallthru
      _
    // Predicated region
    $region38: #{tpu_custom_call.1} parent=1 // pred_check
      _
    $region39: #{tpu_custom_call.1} parent=1 // pred_check_branch
      %297 = sbr.rel (0) target = $region41
    $region40: #{tpu_custom_call.1} parent=1 // pred_region
      %299 = dma.done [#allocation4], 256
    $region41: #{tpu_custom_call.1} parent=1 // pred_fallthru
      _
    %300 = vsyncpa [#allocation3], 1
    %301 = vsyncpa [#allocation6], 1
    %302 = vsyncpa [#allocation4], 1

</llo_original>
